<compile_context>
chip_gen: v7x
topology: tpu7x:2x2x1
jax: 0.10.0
libtpu: 0.0.40
codegen_flags: <defaults>
</compile_context>

<pallas_src>
import jax
import jax.numpy as jnp
from jax.experimental import pallas as pl
from jax.experimental.pallas import tpu as pltpu

# ----- problem sizes (small, consistent with NCHW image input) -----
N, C, H, W = 2, 3, 16, 16      # batch, channels, spatial
P = 4                          # patch size
T = (H // P) * (W // P)        # tokens per image = 16
K = C * P * P                  # flattened patch dim = 48
D = 64                         # embedding dim
FEAT = 2 * D                   # 128 -> lane-dense output
BN_EPS = 1e-5


# --------------------------------------------------------------------------
# Fused kernel: patch-embed (norm folded in) -> tokens (VMEM scratch) ->
#               mean-pool -> cls projection -> "concat" -> BN-neck scale/shift
# --------------------------------------------------------------------------
def _fused_baseline_kernel(p_ref, wp_ref, wc_ref, prm_ref, o_ref, tok_ref):
    # p_ref   : (N*T, K)  im2col patches of the RAW images
    # wp_ref  : (K, D)    patch-embed weight with pixel mean/std folded in
    # wc_ref  : (D, D)    cls-token projection weight
    # prm_ref : (6, D)    packed params:
    #                     [b_fold, b_cls, bn_scale[:D], bn_shift[:D], bn_scale[D:], bn_shift[D:]]
    # o_ref   : (N, FEAT) BN-neck features
    # tok_ref : (N*T, D)  VMEM scratch holding the token embeddings

    # 1) patch embedding (MXU); pixel normalization already folded into wp / b_fold.
    tok_ref[...] = (
        jnp.dot(p_ref[...], wp_ref[...], preferred_element_type=jnp.float32)
        + prm_ref[0:1, :]
    )

    # 2) per-image mean pool over the T tokens = encoder_features.
    #    Done as a small block-diagonal (N, N*T) averaging matmul on the MXU
    #    (avoids an in-kernel reshape + cross-sublane reduce).
    row = jax.lax.broadcasted_iota(jnp.int32, (N, N * T), 0)
    col = jax.lax.broadcasted_iota(jnp.int32, (N, N * T), 1)
    in_img = (col >= row * T) & (col < row * T + T)
    pool = jnp.where(in_img, jnp.float32(1.0 / T), jnp.float32(0.0))
    pooled = jnp.dot(pool, tok_ref[...], preferred_element_type=jnp.float32)   # (N, D)

    # 3) cls-token projection.
    cls_tok = (
        jnp.dot(pooled, wc_ref[...], preferred_element_type=jnp.float32)
        + prm_ref[1:2, :]
    )

    # 4) features = cat([encoder_features, cls_token]) followed by the BN neck
    #    (pre-folded to scale/shift).  The concat is realized as two direct slice
    #    stores into the lane-dense (N, 128) output -- no jnp.concatenate copy.
    o_ref[:, :D] = pooled * prm_ref[2:3, :] + prm_ref[3:4, :]
    o_ref[:, D:] = cls_tok * prm_ref[4:5, :] + prm_ref[5:6, :]


def _fused_baseline_call(patches, w_fold, w_cls, packed):
    return pl.pallas_call(
        _fused_baseline_kernel,
        out_shape=jax.ShapeDtypeStruct((N, FEAT), jnp.float32),
        grid_spec=pltpu.PrefetchScalarGridSpec(
            num_scalar_prefetch=0,
            grid=(1,),
            in_specs=[
                pl.BlockSpec((N * T, K), lambda i: (0, 0)),
                pl.BlockSpec((K, D), lambda i: (0, 0)),
                pl.BlockSpec((D, D), lambda i: (0, 0)),
                pl.BlockSpec((6, D), lambda i: (0, 0)),
            ],
            out_specs=pl.BlockSpec((N, FEAT), lambda i: (0, 0)),
            scratch_shapes=[pltpu.VMEM((N * T, D), jnp.float32)],
        ),
        # grid=(1,) today; when the real (much larger) ViT backbone lands, add a
        # batch/token "parallel" axis here so v7x's 2nd TensorCore is used.
        compiler_params=pltpu.CompilerParams(
            dimension_semantics=("arbitrary",),
        ),
    )(patches, w_fold, w_cls, packed)


# --------------------------------------------------------------------------
# One-time host-side parameter preparation (folding / packing)
# --------------------------------------------------------------------------
def prepare_inference_params(params):
    mean = params["pixel_mean"]                     # (C,)
    std = params["pixel_std"]                       # (C,)

    # Fold (x - mean) / std into the patch-embed weights (rows are c-major: k = c*P*P + ...).
    w3 = params["w_patch"].reshape(C, P * P, D)
    w_fold = (w3 / std[:, None, None]).reshape(K, D)
    b_fold = params["b_patch"].reshape(D) - jnp.einsum("c,cpd->d", mean / std, w3)

    # Fold the BN neck into scale/shift.
    bn_scale = params["bn_gamma"].reshape(FEAT) * jax.lax.rsqrt(
        params["bn_var"].reshape(FEAT) + BN_EPS)
    bn_shift = params["bn_beta"].reshape(FEAT) - params["bn_mean"].reshape(FEAT) * bn_scale

    packed = jnp.stack(
        [
            b_fold,
            params["b_cls"].reshape(D),
            bn_scale[:D], bn_shift[:D],
            bn_scale[D:], bn_shift[D:],
        ],
        axis=0,
    ).astype(jnp.float32)                           # (6, D)

    return {
        "w_fold": w_fold.astype(jnp.float32),
        "w_cls": params["w_cls"].astype(jnp.float32),
        "packed": packed,
    }


# --------------------------------------------------------------------------
# Baseline.forward (eval / inference path)
# --------------------------------------------------------------------------
@jax.jit
def baseline_forward(images, prep):
    # im2col of the RAW images (cheap reshape/transpose feeding the single fused
    # kernel; pixel normalization is folded into the patch-embed weights so no
    # normalized image ever hits HBM).
    x = images.reshape(N, C, H // P, P, W // P, P)
    patches = jnp.transpose(x, (0, 2, 4, 1, 3, 5)).reshape(N * T, K)
    # TODO(synk): real backbone is a registry-built transformer taking (images, data_name, masks);
    #             this fused kernel stands in for it with a patch-embed + pool + cls head.
    # TODO(synk): training branch (cross_entropy/triplet/circle/cosface/hint losses) not implemented.
    return _fused_baseline_call(patches, prep["w_fold"], prep["w_cls"], prep["packed"])


# --------------------------------------------------------------------------
# Parameter construction + pure-JAX reference (for a sanity check)
# --------------------------------------------------------------------------
def make_params(key):
    ks = jax.random.split(key, 6)
    return {
        "pixel_mean": jnp.array([123.675, 116.28, 103.53], jnp.float32),
        "pixel_std": jnp.array([58.395, 57.12, 57.375], jnp.float32),
        "w_patch": 0.02 * jax.random.normal(ks[0], (K, D), jnp.float32),
        "b_patch": jnp.zeros((1, D), jnp.float32),
        "w_cls": 0.02 * jax.random.normal(ks[1], (D, D), jnp.float32),
        "b_cls": jnp.zeros((1, D), jnp.float32),
        "bn_gamma": jnp.ones((1, FEAT), jnp.float32),
        "bn_beta": jnp.zeros((1, FEAT), jnp.float32),
        "bn_mean": 0.01 * jax.random.normal(ks[2], (1, FEAT), jnp.float32),
        "bn_var": jnp.ones((1, FEAT), jnp.float32)
                  + 0.01 * jax.random.uniform(ks[3], (1, FEAT), jnp.float32),
    }


def baseline_reference(images, params):
    mean = params["pixel_mean"].reshape(1, C, 1, 1)
    std = params["pixel_std"].reshape(1, C, 1, 1)
    xn = (images - mean) / std
    x = xn.reshape(N, C, H // P, P, W // P, P)
    patches = jnp.transpose(x, (0, 2, 4, 1, 3, 5)).reshape(N * T, K)
    tokens = (patches @ params["w_patch"] + params["b_patch"]).reshape(N, T, D)
    pooled = tokens.mean(axis=1)
    cls_tok = pooled @ params["w_cls"] + params["b_cls"]
    feat = jnp.concatenate([pooled, cls_tok], axis=-1)
    inv = jax.lax.rsqrt(params["bn_var"] + BN_EPS)
    return (feat - params["bn_mean"]) * inv * params["bn_gamma"] + params["bn_beta"]


if __name__ == "__main__":
    key = jax.random.PRNGKey(0)
    k_img, k_par = jax.random.split(key)
    # images in [0, 255] as the Torch pipeline feeds un-normalized pixels (NCHW)
    images = 255.0 * jax.random.uniform(k_img, (N, C, H, W), jnp.float32)
    params = make_params(k_par)

    # data_name lookup glue (string matching on img_paths — pure Python, no kernel)
    train_set_to_num = {"market1501": 0, "DukeMTMC-reID": 1}
    img_path = "/data/market1501/bounding_box_test/0001_c1s1_000151_00.jpg"
    data_name = next((i for n, i in train_set_to_num.items() if n in img_path), -1)
    del data_name  # synthetic backbone ignores it

    prep = prepare_inference_params(params)        # one-time host-side folding/packing
    out = baseline_forward(images, prep)
    jax.block_until_ready(out)

    assert out.shape == (N, FEAT) and out.dtype == jnp.float32
    ref = baseline_reference(images, params)
    assert jnp.allclose(out, ref, atol=1e-3, rtol=1e-3), float(jnp.max(jnp.abs(out - ref)))
    print("KERNEL_OK")
</pallas_src>

<mosaic_0001>
module attributes {stable_mosaic.version = 11 : i64} {
  func.func @_fused_baseline_kernel(%arg0: i32, %arg1: memref<32x48xf32, #tpu.memory_space<vmem>>, %arg2: memref<48x64xf32, #tpu.memory_space<vmem>>, %arg3: memref<64x64xf32, #tpu.memory_space<vmem>>, %arg4: memref<6x64xf32, #tpu.memory_space<vmem>>, %arg5: memref<2x128xf32, #tpu.memory_space<vmem>>, %arg6: memref<32x64xf32, #tpu.memory_space<vmem>>) attributes {dimension_semantics = [#tpu.dimension_semantics<arbitrary>], iteration_bounds = array<i64: 1>, scalar_prefetch = 0 : i64, scratch_operands = 1 : i64, tpu.core_type = #tpu.core_type<tc>, window_params = [{pipeline_mode = #tpu.pipeline_mode<synchronous>, transform_indices = @transform_0, window_bounds = array<i64: 32, 48>}, {pipeline_mode = #tpu.pipeline_mode<synchronous>, transform_indices = @transform_1, window_bounds = array<i64: 48, 64>}, {pipeline_mode = #tpu.pipeline_mode<synchronous>, transform_indices = @transform_2, window_bounds = array<i64: 64, 64>}, {pipeline_mode = #tpu.pipeline_mode<synchronous>, transform_indices = @transform_3, window_bounds = array<i64: 6, 64>}, {pipeline_mode = #tpu.pipeline_mode<synchronous>, transform_indices = @transform_4, window_bounds = array<i64: 2, 128>}]} {
    %c0 = arith.constant 0 : index
    %c0_0 = arith.constant 0 : index
    %0 = vector.load %arg1[%c0, %c0_0] : memref<32x48xf32, #tpu.memory_space<vmem>>, vector<32x48xf32>
    %c0_1 = arith.constant 0 : index
    %c0_2 = arith.constant 0 : index
    %1 = vector.load %arg2[%c0_1, %c0_2] : memref<48x64xf32, #tpu.memory_space<vmem>>, vector<48x64xf32>
    %cst = arith.constant dense<0.000000e+00> : vector<32x64xf32>
    %2 = tpu.matmul %0, %1, %cst {dimension_numbers = #tpu.dot_dimension_numbers<[1], [0], [0], [1], [0, 0, 1, 1], [], []>} : vector<32x48xf32>, vector<48x64xf32>, vector<32x64xf32> -> vector<32x64xf32>
    %c0_3 = arith.constant 0 : index
    %c0_4 = arith.constant 0 : index
    %3 = vector.load %arg4[%c0_3, %c0_4] : memref<6x64xf32, #tpu.memory_space<vmem>>, vector<1x64xf32>
    %4 = vector.broadcast %3 : vector<1x64xf32> to vector<32x64xf32>
    %5 = arith.addf %2, %4 : vector<32x64xf32>
    %c0_5 = arith.constant 0 : index
    %c0_6 = arith.constant 0 : index
    %6 = vector.load %arg6[%c0_5, %c0_6] : memref<32x64xf32, #tpu.memory_space<vmem>>, vector<32x64xf32>
    tpu.vector_store %arg6[%c0_5, %c0_6], %5 {strides = array<i32>} : memref<32x64xf32, #tpu.memory_space<vmem>>, vector<32x64xf32>,
    %7 = tpu.iota {dimensions = array<i32: 0>} : vector<2x32xi32>
    %8 = tpu.iota {dimensions = array<i32: 1>} : vector<2x32xi32>
    %c16_i32 = arith.constant 16 : i32
    %9 = vector.broadcast %c16_i32 : i32 to vector<2x32xi32>
    %10 = arith.muli %7, %9 : vector<2x32xi32>
    %11 = arith.cmpi sge, %8, %10 : vector<2x32xi32>
    %c16_i32_7 = arith.constant 16 : i32
    %12 = vector.broadcast %c16_i32_7 : i32 to vector<2x32xi32>
    %13 = arith.muli %7, %12 : vector<2x32xi32>
    %c16_i32_8 = arith.constant 16 : i32
    %14 = vector.broadcast %c16_i32_8 : i32 to vector<2x32xi32>
    %15 = arith.addi %13, %14 : vector<2x32xi32>
    %16 = arith.cmpi slt, %8, %15 : vector<2x32xi32>
    %17 = arith.andi %11, %16 : vector<2x32xi1>
    %cst_9 = arith.constant 6.250000e-02 : f32
    %cst_10 = arith.constant 0.000000e+00 : f32
    %18 = vector.broadcast %cst_9 : f32 to vector<2x32xf32>
    %19 = vector.broadcast %cst_10 : f32 to vector<2x32xf32>
    %20 = arith.select %17, %18, %19 : vector<2x32xi1>, vector<2x32xf32>
    %c0_11 = arith.constant 0 : index
    %c0_12 = arith.constant 0 : index
    %21 = vector.load %arg6[%c0_11, %c0_12] : memref<32x64xf32, #tpu.memory_space<vmem>>, vector<32x64xf32>
    %cst_13 = arith.constant dense<0.000000e+00> : vector<2x64xf32>
    %22 = tpu.matmul %20, %21, %cst_13 {dimension_numbers = #tpu.dot_dimension_numbers<[1], [0], [0], [1], [0, 0, 1, 1], [], []>} : vector<2x32xf32>, vector<32x64xf32>, vector<2x64xf32> -> vector<2x64xf32>
    %c0_14 = arith.constant 0 : index
    %c0_15 = arith.constant 0 : index
    %23 = vector.load %arg3[%c0_14, %c0_15] : memref<64x64xf32, #tpu.memory_space<vmem>>, vector<64x64xf32>
    %cst_16 = arith.constant dense<0.000000e+00> : vector<2x64xf32>
    %24 = tpu.matmul %22, %23, %cst_16 {dimension_numbers = #tpu.dot_dimension_numbers<[1], [0], [0], [1], [0, 0, 1, 1], [], []>} : vector<2x64xf32>, vector<64x64xf32>, vector<2x64xf32> -> vector<2x64xf32>
    %c1 = arith.constant 1 : index
    %c0_17 = arith.constant 0 : index
    %25 = vector.load %arg4[%c1, %c0_17] : memref<6x64xf32, #tpu.memory_space<vmem>>, vector<1x64xf32>
    %26 = vector.broadcast %25 : vector<1x64xf32> to vector<2x64xf32>
    %27 = arith.addf %24, %26 : vector<2x64xf32>
    %c2 = arith.constant 2 : index
    %c0_18 = arith.constant 0 : index
    %28 = vector.load %arg4[%c2, %c0_18] : memref<6x64xf32, #tpu.memory_space<vmem>>, vector<1x64xf32>
    %29 = vector.broadcast %28 : vector<1x64xf32> to vector<2x64xf32>
    %30 = arith.mulf %22, %29 : vector<2x64xf32>
    %c3 = arith.constant 3 : index
    %c0_19 = arith.constant 0 : index
    %31 = vector.load %arg4[%c3, %c0_19] : memref<6x64xf32, #tpu.memory_space<vmem>>, vector<1x64xf32>
    %32 = vector.broadcast %31 : vector<1x64xf32> to vector<2x64xf32>
    %33 = arith.addf %30, %32 : vector<2x64xf32>
    %c0_20 = arith.constant 0 : index
    %c0_21 = arith.constant 0 : index
    %34 = vector.load %arg5[%c0_20, %c0_21] : memref<2x128xf32, #tpu.memory_space<vmem>>, vector<2x64xf32>
    tpu.vector_store %arg5[%c0_20, %c0_21], %33 {strides = array<i32>} : memref<2x128xf32, #tpu.memory_space<vmem>>, vector<2x64xf32>,
    %c4 = arith.constant 4 : index
    %c0_22 = arith.constant 0 : index
    %35 = vector.load %arg4[%c4, %c0_22] : memref<6x64xf32, #tpu.memory_space<vmem>>, vector<1x64xf32>
    %36 = vector.broadcast %35 : vector<1x64xf32> to vector<2x64xf32>
    %37 = arith.mulf %27, %36 : vector<2x64xf32>
    %c5 = arith.constant 5 : index
    %c0_23 = arith.constant 0 : index
    %38 = vector.load %arg4[%c5, %c0_23] : memref<6x64xf32, #tpu.memory_space<vmem>>, vector<1x64xf32>
    %39 = vector.broadcast %38 : vector<1x64xf32> to vector<2x64xf32>
    %40 = arith.addf %37, %39 : vector<2x64xf32>
    %c0_24 = arith.constant 0 : index
    %c64 = arith.constant 64 : index
    %41 = vector.load %arg5[%c0_24, %c64] : memref<2x128xf32, #tpu.memory_space<vmem>>, vector<2x64xf32>
    tpu.vector_store %arg5[%c0_24, %c64], %40 {strides = array<i32>} : memref<2x128xf32, #tpu.memory_space<vmem>>, vector<2x64xf32>,
    return
  }
  func.func @transform_0(%arg0: i32) -> (i32, i32) {
    %c0_i32 = arith.constant 0 : i32
    %c0_i32_0 = arith.constant 0 : i32
    %c0_i32_1 = arith.constant 0 : i32
    return %c0_i32, %c0_i32_0 : i32, i32
  }
  func.func @transform_1(%arg0: i32) -> (i32, i32) {
    %c0_i32 = arith.constant 0 : i32
    %c0_i32_0 = arith.constant 0 : i32
    %c0_i32_1 = arith.constant 0 : i32
    return %c0_i32, %c0_i32_0 : i32, i32
  }
  func.func @transform_2(%arg0: i32) -> (i32, i32) {
    %c0_i32 = arith.constant 0 : i32
    %c0_i32_0 = arith.constant 0 : i32
    %c0_i32_1 = arith.constant 0 : i32
    return %c0_i32, %c0_i32_0 : i32, i32
  }
  func.func @transform_3(%arg0: i32) -> (i32, i32) {
    %c0_i32 = arith.constant 0 : i32
    %c0_i32_0 = arith.constant 0 : i32
    %c0_i32_1 = arith.constant 0 : i32
    return %c0_i32, %c0_i32_0 : i32, i32
  }
  func.func @transform_4(%arg0: i32) -> (i32, i32) {
    %c0_i32 = arith.constant 0 : i32
    %c0_i32_0 = arith.constant 0 : i32
    %c0_i32_1 = arith.constant 0 : i32
    return %c0_i32, %c0_i32_0 : i32, i32
  }
}

</mosaic_0001>

<llo_original>
// kernel: baseline_forward.1
$region0: #{baseline_forward.1}
  #allocation0 [shape = 'u32[]', space=smem, size = 0x4, offset = 0x4, fixed_abs, tag = 'smem constant byte address 0x4 - core index']
  #allocation1 [shape = 'u32[144,128]{1,0:T(1,128)}', space=vmem, size = 0x12000, scoped, tag = 'internal scratch']
  #allocation2 [shape = 'f32[32,64]{1,0:T(8,128)}', space=vmem, size = 0x4000, scoped, tag = 'scratch operand']
  %s0 = inlined_call_operand.vmem [shape: f32[32,48], index: 0, kind: input, shape index: {}]
  %s1 = inlined_call_operand.vmem [shape: f32[48,64], index: 1, kind: input, shape index: {}]
  %s2 = inlined_call_operand.vmem [shape: f32[64,64], index: 2, kind: input, shape index: {}]
  %s3 = inlined_call_operand.vmem [shape: f32[6,64], index: 3, kind: input, shape index: {}]
  %s4 = inlined_call_operand.hbm [shape: f32[2,128], index: 4, kind: output, shape index: {}]
  %s5 = sld [smem:[#allocation0]]
  $region26: #{baseline_forward.1} parent=0
    _
  %s7 = ssub.s32 1, %s5
  %s8 = scalar_select 0, %s7, %s5
  $region1: #{baseline_forward.1} parent=0
    #allocation3 [shape = 'u8[1024]{0}', space=vmem, size = 0x400, scoped, tag = 'output window, operand 0, single buffered']
    #allocation4 [shape = 's32[1]{0}', space=sflag, size = 0x4, scoped, tag = 'scoped memory for baseline_forward.1']
    %9 = vsyncpa [#allocation4], 0
    // Predicated region
    $region2: #{baseline_forward.1} parent=1 // pred_check
      _
    $region3: #{baseline_forward.1} parent=1 // pred_check_branch
      %11 = sbr.rel (0) target = $region5
    $region4: #{baseline_forward.1} parent=1 // pred_region
      _
    $region5: #{baseline_forward.1} parent=1 // pred_fallthru
      _
    // Predicated region
    $region6: #{baseline_forward.1} parent=1 // pred_check
      _
    $region7: #{baseline_forward.1} parent=1 // pred_check_branch
      %13 = sbr.rel (0) target = $region9
    $region8: #{baseline_forward.1} parent=1 // pred_region
      _
    $region9: #{baseline_forward.1} parent=1 // pred_fallthru
      _
    // Predicated region
    $region10: #{baseline_forward.1} parent=1 // pred_check
      _
    $region11: #{baseline_forward.1} parent=1 // pred_check_branch
      %15 = sbr.rel (0) target = $region13
    $region12: #{baseline_forward.1} parent=1 // pred_region
      _
    $region13: #{baseline_forward.1} parent=1 // pred_fallthru
      _
    // Predicated region
    $region14: #{baseline_forward.1} parent=1 // pred_check
      _
    $region15: #{baseline_forward.1} parent=1 // pred_check_branch
      %17 = sbr.rel (0) target = $region17
    $region16: #{baseline_forward.1} parent=1 // pred_region
      _
    $region17: #{baseline_forward.1} parent=1 // pred_fallthru
      _
    %v18 = vld [vmem:[%s0] sm:$0xff]
    %v19 = vld [vmem:[%s0 + $0x8] sm:$0xff]
    %v20 = vld [vmem:[%s0 + $0x10] sm:$0xff]
    %v21 = vld [vmem:[%s0 + $0x18] sm:$0xff]
    %v22 = vld [vmem:[%s1] sm:$0xff]
    %v23 = vld [vmem:[%s1 + $0x8] sm:$0xff]
    %v24 = vld [vmem:[%s1 + $0x10] sm:$0xff]
    %v25 = vld [vmem:[%s1 + $0x18] sm:$0xff]
    %v26 = vld [vmem:[%s1 + $0x20] sm:$0xff]
    %v27 = vld [vmem:[%s1 + $0x28] sm:$0xff]
    %v28 = vld [vmem:[%s3] sm:$0x1]
    %v29 = vlaneseq
    %v30 = vshrl.u32 %v29, 7
    %v31 = vsub.s32 0, %v30
    %v32 = vrot.slane %v28, %v31
    %vm33 = vcmask 392192
    %v35 = vsel %vm33, %v18, 0
    %v38 = vsel %vm33, %v19, 0
    %v41 = vsel %vm33, %v20, 0
    %v44 = vsel %vm33, %v21, 0
    %46 = vmatprep.subr.mxu0 0.0
    %47 = vmatpush1.msra.mxu0 %v22
    %48 = vmatprep.subr.mxu0 0.0
    %49 = vmatpush1.msra.mxu0 %v23
    %50 = vmatprep.subr.mxu0 0.0
    %51 = vmatpush1.msra.mxu0 %v24
    %52 = vmatprep.subr.mxu0 0.0
    %53 = vmatpush1.msra.mxu0 %v25
    %54 = vmatprep.subr.mxu0 0.0
    %55 = vmatpush1.msra.mxu0 %v26
    %56 = vmatprep.subr.mxu0 0.0
    %57 = vmatpush1.msra.mxu0 %v27
    %58 = vmatprep.subr.mxu0 0.0
    %59 = vmatpush1.msra.mxu0 0.0
    %60 = vmatprep.subr.mxu0 0.0
    %61 = vmatpush1.msra.mxu0 0.0
    %62 = vmatprep.subr.mxu0 0.0
    %63 = vmatpush1.msra.mxu0 0.0
    %64 = vmatprep.subr.mxu0 0.0
    %65 = vmatpush1.msra.mxu0 0.0
    %66 = vmatprep.subr.mxu0 0.0
    %67 = vmatpush1.msra.mxu0 0.0
    %68 = vmatprep.subr.mxu0 0.0
    %69 = vmatpush1.msra.mxu0 0.0
    %70 = vmatprep.subr.mxu0 0.0
    %71 = vmatpush1.msra.mxu0 0.0
    %72 = vmatprep.subr.mxu0 0.0
    %73 = vmatpush1.msra.mxu0 0.0
    %74 = vmatprep.subr.mxu0 0.0
    %75 = vmatpush1.msra.mxu0 0.0
    %76 = vmatprep.subr.mxu0 0.0
    %77 = vmatpush1.msra.mxu0 0.0
    %78 = vmatprep.subr.mxu0 0.0
    %79 = vmatpush1.msra.mxu0 0.0
    %80 = vmatprep.subr.mxu0 0.0
    %81 = vmatpush1.msra.mxu0 0.0
    %82 = vmatprep.subr.mxu0 0.0
    %83 = vmatpush1.msra.mxu0 0.0
    %84 = vmatprep.subr.mxu0 0.0
    %85 = vmatpush1.msra.mxu0 0.0
    %86 = vmatprep.subr.mxu0 0.0
    %87 = vmatpush1.msra.mxu0 0.0
    %88 = vmatprep.subr.mxu0 0.0
    %89 = vmatpush1.msra.mxu0 0.0
    %90 = vmatprep.subr.mxu0 0.0
    %91 = vmatpush1.msra.mxu0 0.0
    %92 = vmatprep.subr.mxu0 0.0
    %93 = vmatpush1.msra.mxu0 0.0
    %94 = vmatprep.subr.mxu0 0.0
    %95 = vmatpush1.msra.mxu0 0.0
    %96 = vmatprep.subr.mxu0 0.0
    %97 = vmatpush1.msra.mxu0 0.0
    %98 = vmatprep.subr.mxu0 0.0
    %99 = vmatpush1.msra.mxu0 0.0
    %100 = vmatprep.subr.mxu0 0.0
    %101 = vmatpush1.msra.mxu0 0.0
    %102 = vmatprep.subr.mxu0 0.0
    %103 = vmatpush1.msra.mxu0 0.0
    %104 = vmatprep.subr.mxu0 0.0
    %105 = vmatpush1.msra.mxu0 0.0
    %106 = vmatprep.subr.mxu0 0.0
    %107 = vmatpush1.msra.mxu0 0.0
    %108 = vmatprep.subr.mxu0 0.0
    %109 = vmatpush1.msra.mxu0 0.0
    %110 = vmatprep.mubr.f32.mxu0 0.0
    %111 = vmatmul.mubr.f32.gmra.mrb[0].mxu0 %v35
    %v112 = vpop.f32.mrb[0].mxu0
    %v113 = vadd.f32 %v32, %v112
    %v114 = vpop.f32.mrb[0].mxu0
    %115 = vmatprep.mubr.f32.mxu0 0.0
    %116 = vmatmul.mubr.f32.gmra.mrb[0].mxu0 %v38
    %v117 = vpop.f32.mrb[0].mxu0
    %v118 = vadd.f32 %v32, %v117
    %v119 = vpop.f32.mrb[0].mxu0
    %120 = vmatprep.mubr.f32.mxu0 0.0
    %121 = vmatmul.mubr.f32.gmra.mrb[0].mxu0 %v41
    %v122 = vpop.f32.mrb[0].mxu0
    %v123 = vadd.f32 %v32, %v122
    %v124 = vpop.f32.mrb[0].mxu0
    %125 = vmatprep.mubr.f32.mxu0 0.0
    %126 = vmatmul.mubr.f32.gmra.mrb[0].mxu0 %v44
    %v127 = vpop.f32.mrb[0].mxu0
    %v128 = vadd.f32 %v32, %v127
    %v129 = vpop.f32.mrb[0].mxu0
    %130 = vdwg.mxu0
    %vm131 = vcmask 523264
    %132 = vst.msk [vmem:[#allocation2] sm:$0xff] %vm131, %v113
    %133 = vst.msk [vmem:[#allocation2 + $0x8] sm:$0xff] %vm131, %v118
    %134 = vst.msk [vmem:[#allocation2 + $0x10] sm:$0xff] %vm131, %v123
    %135 = vst.msk [vmem:[#allocation2 + $0x18] sm:$0xff] %vm131, %v128
    %v136 = vlaneseq
    %v137 = vshrl.u32 %v136, 7
    %v138 = vlaneseq
    %v139 = vand.u32 %v138, 127
    %v140 = vmul.u32 %v137, 16
    %vm141 = vcmp.ge.s32.totalorder %v139, %v140
    %v142 = vadd.s32 %v140, 16
    %vm143 = vcmp.lt.s32.totalorder %v139, %v142
    %vm144 = vmand %vm141, %vm143
    %v145 = vsel %vm144, 0.0625, 0.0
    %v146 = vld [vmem:[#allocation2] sm:$0xff]
    %v147 = vld [vmem:[#allocation2 + $0x8] sm:$0xff]
    %v148 = vld [vmem:[#allocation2 + $0x10] sm:$0xff]
    %v149 = vld [vmem:[#allocation2 + $0x18] sm:$0xff]
    %vm150 = vcmask 261120
    %v152 = vsel %vm150, %v145, 0
    %154 = vmatprep.subr.mxu0 0.0
    %155 = vmatpush1.msra.mxu0 %v146
    %156 = vmatprep.subr.mxu0 0.0
    %157 = vmatpush1.msra.mxu0 %v147
    %158 = vmatprep.subr.mxu0 0.0
    %159 = vmatpush1.msra.mxu0 %v148
    %160 = vmatprep.subr.mxu0 0.0
    %161 = vmatpush1.msra.mxu0 %v149
    %162 = vmatprep.subr.mxu0 0.0
    %163 = vmatpush1.msra.mxu0 0.0
    %164 = vmatprep.subr.mxu0 0.0
    %165 = vmatpush1.msra.mxu0 0.0
    %166 = vmatprep.subr.mxu0 0.0
    %167 = vmatpush1.msra.mxu0 0.0
    %168 = vmatprep.subr.mxu0 0.0
    %169 = vmatpush1.msra.mxu0 0.0
    %170 = vmatprep.subr.mxu0 0.0
    %171 = vmatpush1.msra.mxu0 0.0
    %172 = vmatprep.subr.mxu0 0.0
    %173 = vmatpush1.msra.mxu0 0.0
    %174 = vmatprep.subr.mxu0 0.0
    %175 = vmatpush1.msra.mxu0 0.0
    %176 = vmatprep.subr.mxu0 0.0
    %177 = vmatpush1.msra.mxu0 0.0
    %178 = vmatprep.subr.mxu0 0.0
    %179 = vmatpush1.msra.mxu0 0.0
    %180 = vmatprep.subr.mxu0 0.0
    %181 = vmatpush1.msra.mxu0 0.0
    %182 = vmatprep.subr.mxu0 0.0
    %183 = vmatpush1.msra.mxu0 0.0
    %184 = vmatprep.subr.mxu0 0.0
    %185 = vmatpush1.msra.mxu0 0.0
    %186 = vmatprep.subr.mxu0 0.0
    %187 = vmatpush1.msra.mxu0 0.0
    %188 = vmatprep.subr.mxu0 0.0
    %189 = vmatpush1.msra.mxu0 0.0
    %190 = vmatprep.subr.mxu0 0.0
    %191 = vmatpush1.msra.mxu0 0.0
    %192 = vmatprep.subr.mxu0 0.0
    %193 = vmatpush1.msra.mxu0 0.0
    %194 = vmatprep.subr.mxu0 0.0
    %195 = vmatpush1.msra.mxu0 0.0
    %196 = vmatprep.subr.mxu0 0.0
    %197 = vmatpush1.msra.mxu0 0.0
    %198 = vmatprep.subr.mxu0 0.0
    %199 = vmatpush1.msra.mxu0 0.0
    %200 = vmatprep.subr.mxu0 0.0
    %201 = vmatpush1.msra.mxu0 0.0
    %202 = vmatprep.subr.mxu0 0.0
    %203 = vmatpush1.msra.mxu0 0.0
    %204 = vmatprep.subr.mxu0 0.0
    %205 = vmatpush1.msra.mxu0 0.0
    %206 = vmatprep.subr.mxu0 0.0
    %207 = vmatpush1.msra.mxu0 0.0
    %208 = vmatprep.subr.mxu0 0.0
    %209 = vmatpush1.msra.mxu0 0.0
    %210 = vmatprep.subr.mxu0 0.0
    %211 = vmatpush1.msra.mxu0 0.0
    %212 = vmatprep.subr.mxu0 0.0
    %213 = vmatpush1.msra.mxu0 0.0
    %214 = vmatprep.subr.mxu0 0.0
    %215 = vmatpush1.msra.mxu0 0.0
    %216 = vmatprep.subr.mxu0 0.0
    %217 = vmatpush1.msra.mxu0 0.0
    %218 = vmatprep.mubr.f32.mxu0 0.0
    %219 = vmatmul.mubr.f32.gmra.mrb[0].mxu0 %v152
    %v220 = vpop.f32.mrb[0].mxu0
    %v221 = vadd.f32 0.0, %v220
    %v222 = vpop.f32.mrb[0].mxu0
    %223 = vdwg.mxu0
    %v224 = vld [vmem:[%s2] sm:$0xff]
    %v225 = vld [vmem:[%s2 + $0x8] sm:$0xff]
    %v226 = vld [vmem:[%s2 + $0x10] sm:$0xff]
    %v227 = vld [vmem:[%s2 + $0x18] sm:$0xff]
    %v228 = vld [vmem:[%s2 + $0x20] sm:$0xff]
    %v229 = vld [vmem:[%s2 + $0x28] sm:$0xff]
    %v230 = vld [vmem:[%s2 + $0x30] sm:$0xff]
    %v231 = vld [vmem:[%s2 + $0x38] sm:$0xff]
    %v232 = vld [vmem:[%s3 + $0x1] sm:$0x1]
    %v233 = vlaneseq
    %v234 = vshrl.u32 %v233, 7
    %v235 = vsub.s32 0, %v234
    %v236 = vrot.slane %v232, %v235
    %v238 = vsel %vm131, %v221, 0
    %240 = vmatprep.subr.mxu0 0.0
    %241 = vmatpush1.msra.mxu0 %v224
    %242 = vmatprep.subr.mxu0 0.0
    %243 = vmatpush1.msra.mxu0 %v225
    %244 = vmatprep.subr.mxu0 0.0
    %245 = vmatpush1.msra.mxu0 %v226
    %246 = vmatprep.subr.mxu0 0.0
    %247 = vmatpush1.msra.mxu0 %v227
    %248 = vmatprep.subr.mxu0 0.0
    %249 = vmatpush1.msra.mxu0 %v228
    %250 = vmatprep.subr.mxu0 0.0
    %251 = vmatpush1.msra.mxu0 %v229
    %252 = vmatprep.subr.mxu0 0.0
    %253 = vmatpush1.msra.mxu0 %v230
    %254 = vmatprep.subr.mxu0 0.0
    %255 = vmatpush1.msra.mxu0 %v231
    %256 = vmatprep.subr.mxu0 0.0
    %257 = vmatpush1.msra.mxu0 0.0
    %258 = vmatprep.subr.mxu0 0.0
    %259 = vmatpush1.msra.mxu0 0.0
    %260 = vmatprep.subr.mxu0 0.0
    %261 = vmatpush1.msra.mxu0 0.0
    %262 = vmatprep.subr.mxu0 0.0
    %263 = vmatpush1.msra.mxu0 0.0
    %264 = vmatprep.subr.mxu0 0.0
    %265 = vmatpush1.msra.mxu0 0.0
    %266 = vmatprep.subr.mxu0 0.0
    %267 = vmatpush1.msra.mxu0 0.0
    %268 = vmatprep.subr.mxu0 0.0
    %269 = vmatpush1.msra.mxu0 0.0
    %270 = vmatprep.subr.mxu0 0.0
    %271 = vmatpush1.msra.mxu0 0.0
    %272 = vmatprep.subr.mxu0 0.0
    %273 = vmatpush1.msra.mxu0 0.0
    %274 = vmatprep.subr.mxu0 0.0
    %275 = vmatpush1.msra.mxu0 0.0
    %276 = vmatprep.subr.mxu0 0.0
    %277 = vmatpush1.msra.mxu0 0.0
    %278 = vmatprep.subr.mxu0 0.0
    %279 = vmatpush1.msra.mxu0 0.0
    %280 = vmatprep.subr.mxu0 0.0
    %281 = vmatpush1.msra.mxu0 0.0
    %282 = vmatprep.subr.mxu0 0.0
    %283 = vmatpush1.msra.mxu0 0.0
    %284 = vmatprep.subr.mxu0 0.0
    %285 = vmatpush1.msra.mxu0 0.0
    %286 = vmatprep.subr.mxu0 0.0
    %287 = vmatpush1.msra.mxu0 0.0
    %288 = vmatprep.subr.mxu0 0.0
    %289 = vmatpush1.msra.mxu0 0.0
    %290 = vmatprep.subr.mxu0 0.0
    %291 = vmatpush1.msra.mxu0 0.0
    %292 = vmatprep.subr.mxu0 0.0
    %293 = vmatpush1.msra.mxu0 0.0
    %294 = vmatprep.subr.mxu0 0.0
    %295 = vmatpush1.msra.mxu0 0.0
    %296 = vmatprep.subr.mxu0 0.0
    %297 = vmatpush1.msra.mxu0 0.0
    %298 = vmatprep.subr.mxu0 0.0
    %299 = vmatpush1.msra.mxu0 0.0
    %300 = vmatprep.subr.mxu0 0.0
    %301 = vmatpush1.msra.mxu0 0.0
    %302 = vmatprep.subr.mxu0 0.0
    %303 = vmatpush1.msra.mxu0 0.0
    %304 = vmatprep.mubr.f32.mxu0 0.0
    %305 = vmatmul.mubr.f32.gmra.mrb[0].mxu0 %v238
    %v306 = vpop.f32.mrb[0].mxu0
    %v307 = vadd.f32 %v236, %v306
    %v308 = vpop.f32.mrb[0].mxu0
    %309 = vdwg.mxu0
    %v310 = vld [vmem:[%s3 + $0x2] sm:$0x1]
    %v311 = vlaneseq
    %v312 = vshrl.u32 %v311, 7
    %v313 = vsub.s32 0, %v312
    %v314 = vrot.slane %v310, %v313
    %v315 = vmul.f32 %v221, %v314
    %v316 = vld [vmem:[%s3 + $0x3] sm:$0x1]
    %v317 = vlaneseq
    %v318 = vshrl.u32 %v317, 7
    %v319 = vsub.s32 0, %v318
    %v320 = vrot.slane %v316, %v319
    %v321 = vadd.f32 %v315, %v320
    %vm322 = vcmask 517120
    %323 = vst.msk [vmem:[#allocation3] sm:$0x3] %vm322, %v321
    %v324 = vld [vmem:[%s3 + $0x4] sm:$0x1]
    %v325 = vlaneseq
    %v326 = vshrl.u32 %v325, 7
    %v327 = vsub.s32 0, %v326
    %v328 = vrot.slane %v324, %v327
    %v329 = vmul.f32 %v307, %v328
    %v330 = vld [vmem:[%s3 + $0x5] sm:$0x1]
    %v331 = vlaneseq
    %v332 = vshrl.u32 %v331, 7
    %v333 = vsub.s32 0, %v332
    %v334 = vrot.slane %v330, %v333
    %v335 = vadd.f32 %v329, %v334
    %337 = vrot.lane.b32.xlu0 %v335, 64
    %v338 = vpop.permute.xlu0 %337
    %vm340 = vcmask 1041920
    %341 = vst.msk [vmem:[#allocation3] sm:$0x3] %vm340, %v338
    // Predicated region
    $region18: #{baseline_forward.1} parent=1 // pred_check
      _
    $region19: #{baseline_forward.1} parent=1 // pred_check_branch
      %343 = sbr.rel (0) target = $region21
    $region20: #{baseline_forward.1} parent=1 // pred_region
      %s345 = ssub.s32 32, 32
      %346 = vsyncadd [#allocation4], %s345
      %s348 = sshll.u32 [#allocation3], 4
      %s349 = int_to_ptr.vmem [resolvable:$true] %s348
      %351 = dma.vmem_to_hbm [thread:$0]  %s349, 32, %s4, [#allocation4]
    $region21: #{baseline_forward.1} parent=1 // pred_fallthru
      _
    // Predicated region
    $region22: #{baseline_forward.1} parent=1 // pred_check
      _
    $region23: #{baseline_forward.1} parent=1 // pred_check_branch
      %353 = sbr.rel (0) target = $region25
    $region24: #{baseline_forward.1} parent=1 // pred_region
      %354 = dma.done [#allocation4], 32
    $region25: #{baseline_forward.1} parent=1 // pred_fallthru
      _
    %355 = vsyncpa [#allocation4], 1

</llo_original>
